<compile_context>
chip_gen: v6e
topology: v6e:2x2x1
jax: 0.10.0
libtpu: 0.0.40
codegen_flags: <defaults>
</compile_context>

<pallas_src>
import functools

import jax
import jax.numpy as jnp
from jax.experimental import pallas as pl
from jax.experimental.pallas import tpu as pltpu

# Problem dimensions from the PyTorch module
DIM_U = 1
DIM_XC = 1
DIM_UE = DIM_U + DIM_XC      # 2  (output dim)
DIM_X = 2
DIM_XE = DIM_X + DIM_XC      # 3  (input dim)
HIDDEN = 8

# TPU layout constants
LANE = 128                   # batch tile granularity (batch sits on lanes)
DEFAULT_TILE_B = 8192        # lane-axis batch tile (multiple of 128)


def _round_up(x, m):
    return ((x + m - 1) // m) * m


def _mlp_kernel(x_ref, w1_ref, b1_ref, w2_ref, b2_ref, o_ref):
    # x_ref : (DIM_XE=3, TILE_B)   -- batch on lanes
    # w1_ref: (HIDDEN=8, DIM_XE=3) -- W1^T (resident)
    # b1_ref: (HIDDEN, 1)
    # w2_ref: (DIM_UE=2, HIDDEN=8) -- W2^T (resident)
    # b2_ref: (DIM_UE, 1)
    # o_ref : (DIM_UE=2, TILE_B)
    h = jnp.tanh(
        jnp.dot(w1_ref[...], x_ref[...], preferred_element_type=jnp.float32)
        + b1_ref[...]
    )
    o_ref[...] = (
        jnp.dot(w2_ref[...], h, preferred_element_type=jnp.float32) + b2_ref[...]
    ).astype(o_ref.dtype)


def prepare_params(w1, b1, w2, b2):
    """Transpose/reshape parameters ONCE (hoisted out of the per-call forward).

    w1: (DIM_XE, HIDDEN), b1: (HIDDEN,), w2: (HIDDEN, DIM_UE), b2: (DIM_UE,)
    No zero-padding needed: the kernel runs the exact (8,3)/(2,8) shapes.
    """
    w1t = jnp.asarray(w1, jnp.float32).T                       # (8, 3)
    b1p = jnp.asarray(b1, jnp.float32).reshape(HIDDEN, 1)      # (8, 1)
    w2t = jnp.asarray(w2, jnp.float32).T                       # (2, 8)
    b2p = jnp.asarray(b2, jnp.float32).reshape(DIM_UE, 1)      # (2, 1)
    return w1t, b1p, w2t, b2p


def _pick_tile(B, tile_b):
    """Static (trace-time) tile-size logic."""
    b_lane = _round_up(B, LANE)
    # Clamp to the batch and round to a multiple of 128 (BlockSpec divisibility).
    tile_b = max(LANE, (min(tile_b, b_lane) // LANE) * LANE)
    # v7x megacore: keep grid length >= 2 so the "parallel" axis spans both TCs.
    if b_lane >= 2 * LANE and tile_b > b_lane // 2:
        tile_b = max(LANE, ((b_lane // 2) // LANE) * LANE)
    b_pad = _round_up(B, tile_b)
    return tile_b, b_pad


def _forward_t_impl(xe_t, padded_params, tile_b):
    """Core feature-major forward.  xe_t: (DIM_XE, B) -> (DIM_UE, B)."""
    w1t, b1p, w2t, b2p = padded_params
    B = xe_t.shape[1]
    tile_b, b_pad = _pick_tile(B, tile_b)
    grid = (b_pad // tile_b,)

    if b_pad != B:
        xe_t = jnp.pad(xe_t, ((0, 0), (0, b_pad - B)))
    xe_t = xe_t.astype(jnp.float32)

    out_t = pl.pallas_call(
        _mlp_kernel,
        out_shape=jax.ShapeDtypeStruct((DIM_UE, b_pad), jnp.float32),
        grid_spec=pltpu.PrefetchScalarGridSpec(
            num_scalar_prefetch=0,
            grid=grid,
            in_specs=[
                pl.BlockSpec((DIM_XE, tile_b), lambda i: (0, i)),     # x tiles
                pl.BlockSpec((HIDDEN, DIM_XE), lambda i: (0, 0)),     # W1^T (resident)
                pl.BlockSpec((HIDDEN, 1), lambda i: (0, 0)),          # b1
                pl.BlockSpec((DIM_UE, HIDDEN), lambda i: (0, 0)),     # W2^T (resident)
                pl.BlockSpec((DIM_UE, 1), lambda i: (0, 0)),          # b2
            ],
            out_specs=pl.BlockSpec((DIM_UE, tile_b), lambda i: (0, i)),
        ),
        compiler_params=pltpu.CompilerParams(
            # Independent batch tiles: pipelined everywhere, 2-TC sharded on v7x.
            dimension_semantics=("parallel",),
        ),
    )(xe_t, w1t, b1p, w2t, b2p)

    # Padded batch columns compute garbage (tanh(b1) etc.) and are sliced off.
    return out_t[:, :B]


@functools.partial(jax.jit, static_argnames=("tile_b",))
def pi_controller_forward_t(xe_t, padded_params, tile_b=DEFAULT_TILE_B):
    """Feature-major fast path: xe_t (DIM_XE, B) -> (DIM_UE, B)."""
    return _forward_t_impl(xe_t, padded_params, tile_b)


@functools.partial(jax.jit, static_argnames=("tile_b",))
def pi_controller_forward(xe, padded_params, tile_b=DEFAULT_TILE_B):
    """Module-compatible: xe (B, DIM_XE) -> (B, DIM_UE)."""
    return _forward_t_impl(xe.T, padded_params, tile_b).T


def init_params(key):
    """Deterministic init mimicking nn.Linear default (uniform +-1/sqrt(fan_in))."""
    k1, k2, k3, k4 = jax.random.split(key, 4)
    bound1 = 1.0 / jnp.sqrt(DIM_XE)
    bound2 = 1.0 / jnp.sqrt(HIDDEN)
    w1 = jax.random.uniform(k1, (DIM_XE, HIDDEN), jnp.float32, -bound1, bound1)
    b1 = jax.random.uniform(k2, (HIDDEN,), jnp.float32, -bound1, bound1)
    w2 = jax.random.uniform(k3, (HIDDEN, DIM_UE), jnp.float32, -bound2, bound2)
    b2 = jax.random.uniform(k4, (DIM_UE,), jnp.float32, -bound2, bound2)
    return w1, b1, w2, b2


if __name__ == "__main__":
    key = jax.random.PRNGKey(0)
    k_params, k_x1, k_x2 = jax.random.split(key, 3)
    w1, b1, w2, b2 = init_params(k_params)
    padded = prepare_params(w1, b1, w2, b2)          # prepared once, reused per call

    def ref_fn(x):
        return jnp.tanh(x @ w1 + b1) @ w2 + b2

    # Small batch (matches the module's typical use), module-compatible layout.
    B = 2
    xe = jax.random.normal(k_x1, (B, DIM_XE), jnp.float32)
    out = pi_controller_forward(xe, padded)
    jax.block_until_ready(out)
    assert out.shape == (B, DIM_UE)
    assert jnp.allclose(out, ref_fn(xe), atol=1e-5, rtol=1e-5)

    # Larger batch: tile_b auto-shrinks so grid >= 2 (double-buffered, 2-TC shardable).
    B2 = 1000
    xe2 = jax.random.normal(k_x2, (B2, DIM_XE), jnp.float32)
    out2 = pi_controller_forward(xe2, padded)
    jax.block_until_ready(out2)
    assert out2.shape == (B2, DIM_UE)
    assert jnp.allclose(out2, ref_fn(xe2), atol=1e-5, rtol=1e-5)

    # Feature-major fast path ((3, B) in -> (2, B) out) with a caller-passed,
    # non-128-multiple tile_b (exercises the rounding robustness fix).
    out3_t = pi_controller_forward_t(jnp.asarray(xe2.T), padded, tile_b=300)
    jax.block_until_ready(out3_t)
    assert out3_t.shape == (DIM_UE, B2)
    assert jnp.allclose(out3_t.T, ref_fn(xe2), atol=1e-5, rtol=1e-5)

    print("KERNEL_OK")
</pallas_src>

<mosaic_0001>
module attributes {stable_mosaic.version = 11 : i64} {
  func.func @_mlp_kernel(%arg0: i32, %arg1: memref<3x128xf32, #tpu.memory_space<vmem>>, %arg2: memref<8x3xf32, #tpu.memory_space<vmem>>, %arg3: memref<8x1xf32, #tpu.memory_space<vmem>>, %arg4: memref<2x8xf32, #tpu.memory_space<vmem>>, %arg5: memref<2x1xf32, #tpu.memory_space<vmem>>, %arg6: memref<2x128xf32, #tpu.memory_space<vmem>>) attributes {dimension_semantics = [#tpu.dimension_semantics<parallel>], iteration_bounds = array<i64: 1>, scalar_prefetch = 0 : i64, scratch_operands = 0 : i64, tpu.core_type = #tpu.core_type<tc>, window_params = [{transform_indices = @transform_0, window_bounds = array<i64: 3, 128>}, {pipeline_mode = #tpu.pipeline_mode<synchronous>, transform_indices = @transform_1, window_bounds = array<i64: 8, 3>}, {pipeline_mode = #tpu.pipeline_mode<synchronous>, transform_indices = @transform_2, window_bounds = array<i64: 8, 1>}, {pipeline_mode = #tpu.pipeline_mode<synchronous>, transform_indices = @transform_3, window_bounds = array<i64: 2, 8>}, {pipeline_mode = #tpu.pipeline_mode<synchronous>, transform_indices = @transform_4, window_bounds = array<i64: 2, 1>}, {transform_indices = @transform_5, window_bounds = array<i64: 2, 128>}]} {
    %c0 = arith.constant 0 : index
    %c0_0 = arith.constant 0 : index
    %0 = vector.load %arg2[%c0, %c0_0] : memref<8x3xf32, #tpu.memory_space<vmem>>, vector<8x3xf32>
    %c0_1 = arith.constant 0 : index
    %c0_2 = arith.constant 0 : index
    %1 = vector.load %arg1[%c0_1, %c0_2] : memref<3x128xf32, #tpu.memory_space<vmem>>, vector<3x128xf32>
    %cst = arith.constant dense<0.000000e+00> : vector<8x128xf32>
    %2 = tpu.matmul %0, %1, %cst {dimension_numbers = #tpu.dot_dimension_numbers<[1], [0], [0], [1], [0, 0, 1, 1], [], []>} : vector<8x3xf32>, vector<3x128xf32>, vector<8x128xf32> -> vector<8x128xf32>
    %c0_3 = arith.constant 0 : index
    %c0_4 = arith.constant 0 : index
    %3 = vector.load %arg3[%c0_3, %c0_4] : memref<8x1xf32, #tpu.memory_space<vmem>>, vector<8x1xf32>
    %4 = vector.broadcast %3 : vector<8x1xf32> to vector<8x128xf32>
    %5 = arith.addf %2, %4 : vector<8x128xf32>
    %6 = math.tanh %5 : vector<8x128xf32>
    %c0_5 = arith.constant 0 : index
    %c0_6 = arith.constant 0 : index
    %7 = vector.load %arg4[%c0_5, %c0_6] : memref<2x8xf32, #tpu.memory_space<vmem>>, vector<2x8xf32>
    %cst_7 = arith.constant dense<0.000000e+00> : vector<2x128xf32>
    %8 = tpu.matmul %7, %6, %cst_7 {dimension_numbers = #tpu.dot_dimension_numbers<[1], [0], [0], [1], [0, 0, 1, 1], [], []>} : vector<2x8xf32>, vector<8x128xf32>, vector<2x128xf32> -> vector<2x128xf32>
    %c0_8 = arith.constant 0 : index
    %c0_9 = arith.constant 0 : index
    %9 = vector.load %arg5[%c0_8, %c0_9] : memref<2x1xf32, #tpu.memory_space<vmem>>, vector<2x1xf32>
    %10 = vector.broadcast %9 : vector<2x1xf32> to vector<2x128xf32>
    %11 = arith.addf %8, %10 : vector<2x128xf32>
    %c0_10 = arith.constant 0 : index
    %c0_11 = arith.constant 0 : index
    %12 = vector.load %arg6[%c0_10, %c0_11] : memref<2x128xf32, #tpu.memory_space<vmem>>, vector<2x128xf32>
    tpu.vector_store %arg6[%c0_10, %c0_11], %11 {strides = array<i32>} : memref<2x128xf32, #tpu.memory_space<vmem>>, vector<2x128xf32>,
    return
  }
  func.func @transform_0(%arg0: i32) -> (i32, i32) {
    %c0_i32 = arith.constant 0 : i32
    %c0_i32_0 = arith.constant 0 : i32
    return %c0_i32, %arg0 : i32, i32
  }
  func.func @transform_1(%arg0: i32) -> (i32, i32) {
    %c0_i32 = arith.constant 0 : i32
    %c0_i32_0 = arith.constant 0 : i32
    %c0_i32_1 = arith.constant 0 : i32
    return %c0_i32, %c0_i32_0 : i32, i32
  }
  func.func @transform_2(%arg0: i32) -> (i32, i32) {
    %c0_i32 = arith.constant 0 : i32
    %c0_i32_0 = arith.constant 0 : i32
    %c0_i32_1 = arith.constant 0 : i32
    return %c0_i32, %c0_i32_0 : i32, i32
  }
  func.func @transform_3(%arg0: i32) -> (i32, i32) {
    %c0_i32 = arith.constant 0 : i32
    %c0_i32_0 = arith.constant 0 : i32
    %c0_i32_1 = arith.constant 0 : i32
    return %c0_i32, %c0_i32_0 : i32, i32
  }
  func.func @transform_4(%arg0: i32) -> (i32, i32) {
    %c0_i32 = arith.constant 0 : i32
    %c0_i32_0 = arith.constant 0 : i32
    %c0_i32_1 = arith.constant 0 : i32
    return %c0_i32, %c0_i32_0 : i32, i32
  }
  func.func @transform_5(%arg0: i32) -> (i32, i32) {
    %c0_i32 = arith.constant 0 : i32
    %c0_i32_0 = arith.constant 0 : i32
    return %c0_i32, %arg0 : i32, i32
  }
}

</mosaic_0001>

<llo_original>
// kernel: pi_controller_forward.1
$region0: #{pi_controller_forward.1}
  #allocation0 [shape = 'u32[]', space=smem, size = 0x4, offset = 0x4, fixed_abs, tag = 'smem constant byte address 0x4 - core index']
  #allocation1 [shape = 'u32[144,128]{1,0:T(1,128)}', space=vmem, size = 0x12000, scoped, tag = 'internal scratch']
  %s0 = inlined_call_operand.vmem [shape: f32[3,128], index: 0, kind: input, shape index: {}]
  %s1 = inlined_call_operand.vmem [shape: f32[8,3], index: 1, kind: input, shape index: {}]
  %s2 = inlined_call_operand.vmem [shape: f32[8,1], index: 2, kind: input, shape index: {}]
  %s3 = inlined_call_operand.vmem [shape: f32[2,8], index: 3, kind: input, shape index: {}]
  %s4 = inlined_call_operand.vmem [shape: f32[2,1], index: 4, kind: input, shape index: {}]
  %s5 = inlined_call_operand.vmem [shape: f32[2,128], index: 5, kind: output, shape index: {}]
  %s6 = sld [smem:[#allocation0]]
  $region30: #{pi_controller_forward.1} parent=0
    _
  %s8 = ssub.s32 1, %s6
  %s9 = scalar_select 0, %s8, %s6
  // Predicated region
  $region2: #{pi_controller_forward.1} parent=0 // pred_check
    _
  $region3: #{pi_controller_forward.1} parent=0 // pred_check_branch
    %11 = sbr.rel (0) target = $region5
  $region4: #{pi_controller_forward.1} parent=0 // pred_region
    _
  $region5: #{pi_controller_forward.1} parent=0 // pred_fallthru
    _
  // Predicated region
  $region6: #{pi_controller_forward.1} parent=0 // pred_check
    _
  $region7: #{pi_controller_forward.1} parent=0 // pred_check_branch
    %13 = sbr.rel (0) target = $region9
  $region8: #{pi_controller_forward.1} parent=0 // pred_region
    _
  $region9: #{pi_controller_forward.1} parent=0 // pred_fallthru
    _
  // Predicated region
  $region10: #{pi_controller_forward.1} parent=0 // pred_check
    _
  $region11: #{pi_controller_forward.1} parent=0 // pred_check_branch
    %15 = sbr.rel (0) target = $region13
  $region12: #{pi_controller_forward.1} parent=0 // pred_region
    _
  $region13: #{pi_controller_forward.1} parent=0 // pred_fallthru
    _
  // Predicated region
  $region14: #{pi_controller_forward.1} parent=0 // pred_check
    _
  $region15: #{pi_controller_forward.1} parent=0 // pred_check_branch
    %17 = sbr.rel (0) target = $region17
  $region16: #{pi_controller_forward.1} parent=0 // pred_region
    _
  $region17: #{pi_controller_forward.1} parent=0 // pred_fallthru
    _
  // Predicated region
  $region18: #{pi_controller_forward.1} parent=0 // pred_check
    _
  $region19: #{pi_controller_forward.1} parent=0 // pred_check_branch
    %19 = sbr.rel (0) target = $region21
  $region20: #{pi_controller_forward.1} parent=0 // pred_region
    _
  $region21: #{pi_controller_forward.1} parent=0 // pred_fallthru
    _
  %v20 = vld [vmem:[%s1] sm:$0xff]
  %v21 = vld [vmem:[%s0] sm:$0x7]
  %v22 = vld [vmem:[%s2] sm:$0xff]
  %24 = vset.pattern.permute.xlu0 0
  %25 = vperm.xlu0 %24, %v22
  %v26 = vpop.permute.xlu0 %25
  %vm28 = vcmask 23552
  %v30 = vsel %vm28, %v20, 0
  %vm32 = vcmask 1042432
  %v34 = vsel %vm32, %v21, 0
  %36 = vmatprep.subr.mxu0 0.0
  %37 = vmatpush1.msra.mxu0 0.0
  %38 = vmatprep.subr.mxu0 0.0
  %39 = vmatpush1.msra.mxu0 0.0
  %40 = vmatprep.subr.mxu0 0.0
  %41 = vmatpush1.msra.mxu0 0.0
  %42 = vmatprep.subr.mxu0 0.0
  %43 = vmatpush1.msra.mxu0 0.0
  %44 = vmatprep.subr.mxu0 0.0
  %45 = vmatpush1.msra.mxu0 0.0
  %46 = vmatprep.subr.mxu0 0.0
  %47 = vmatpush1.msra.mxu0 0.0
  %48 = vmatprep.subr.mxu0 0.0
  %49 = vmatpush1.msra.mxu0 0.0
  %50 = vmatprep.subr.mxu0 0.0
  %51 = vmatpush1.msra.mxu0 0.0
  %52 = vmatprep.subr.mxu0 0.0
  %53 = vmatpush1.msra.mxu0 0.0
  %54 = vmatprep.subr.mxu0 0.0
  %55 = vmatpush1.msra.mxu0 0.0
  %56 = vmatprep.subr.mxu0 0.0
  %57 = vmatpush1.msra.mxu0 0.0
  %58 = vmatprep.subr.mxu0 0.0
  %59 = vmatpush1.msra.mxu0 0.0
  %60 = vmatprep.subr.mxu0 0.0
  %61 = vmatpush1.msra.mxu0 0.0
  %62 = vmatprep.subr.mxu0 0.0
  %63 = vmatpush1.msra.mxu0 0.0
  %64 = vmatprep.subr.mxu0 0.0
  %65 = vmatpush1.msra.mxu0 0.0
  %66 = vmatprep.subr.mxu0 0.0
  %67 = vmatpush1.msra.mxu0 %v34
  %68 = vmatprep.subr.mxu0 0.0
  %69 = vmatpush2.msra.mxu0 0.0
  %70 = vmatprep.subr.mxu0 0.0
  %71 = vmatpush2.msra.mxu0 0.0
  %72 = vmatprep.subr.mxu0 0.0
  %73 = vmatpush2.msra.mxu0 0.0
  %74 = vmatprep.subr.mxu0 0.0
  %75 = vmatpush2.msra.mxu0 0.0
  %76 = vmatprep.subr.mxu0 0.0
  %77 = vmatpush2.msra.mxu0 0.0
  %78 = vmatprep.subr.mxu0 0.0
  %79 = vmatpush2.msra.mxu0 0.0
  %80 = vmatprep.subr.mxu0 0.0
  %81 = vmatpush2.msra.mxu0 0.0
  %82 = vmatprep.subr.mxu0 0.0
  %83 = vmatpush2.msra.mxu0 0.0
  %84 = vmatprep.subr.mxu0 0.0
  %85 = vmatpush2.msra.mxu0 0.0
  %86 = vmatprep.subr.mxu0 0.0
  %87 = vmatpush2.msra.mxu0 0.0
  %88 = vmatprep.subr.mxu0 0.0
  %89 = vmatpush2.msra.mxu0 0.0
  %90 = vmatprep.subr.mxu0 0.0
  %91 = vmatpush2.msra.mxu0 0.0
  %92 = vmatprep.subr.mxu0 0.0
  %93 = vmatpush2.msra.mxu0 0.0
  %94 = vmatprep.subr.mxu0 0.0
  %95 = vmatpush2.msra.mxu0 0.0
  %96 = vmatprep.subr.mxu0 0.0
  %97 = vmatpush2.msra.mxu0 0.0
  %98 = vmatprep.subr.mxu0 0.0
  %99 = vmatpush2.msra.mxu0 0.0
  %100 = vmatprep.mubr.f32.mxu0 0.0
  %101 = vmatmul.mubr.f32.gmra.mxu0 %v30
  %v102 = vpop.f32.mrf.mxu0
  %v103 = vadd.f32 %v26, %v102
  %v104 = vpop.f32.mrf.mxu0
  %105 = vdwg.mxu0
  %v106 = vtanh.pop %v103
  %v107 = vld [vmem:[%s3] sm:$0x3]
  %v108 = vld [vmem:[%s4] sm:$0x3]
  %110 = vset.pattern.permute.xlu0 0
  %111 = vperm.xlu0 %110, %v108
  %v112 = vpop.permute.xlu0 %111
  %vm114 = vcmask 64512
  %v116 = vsel %vm114, %v107, 0
  %118 = vmatprep.subr.mxu0 0.0
  %119 = vmatpush1.msra.mxu0 0.0
  %120 = vmatprep.subr.mxu0 0.0
  %121 = vmatpush1.msra.mxu0 0.0
  %122 = vmatprep.subr.mxu0 0.0
  %123 = vmatpush1.msra.mxu0 0.0
  %124 = vmatprep.subr.mxu0 0.0
  %125 = vmatpush1.msra.mxu0 0.0
  %126 = vmatprep.subr.mxu0 0.0
  %127 = vmatpush1.msra.mxu0 0.0
  %128 = vmatprep.subr.mxu0 0.0
  %129 = vmatpush1.msra.mxu0 0.0
  %130 = vmatprep.subr.mxu0 0.0
  %131 = vmatpush1.msra.mxu0 0.0
  %132 = vmatprep.subr.mxu0 0.0
  %133 = vmatpush1.msra.mxu0 0.0
  %134 = vmatprep.subr.mxu0 0.0
  %135 = vmatpush1.msra.mxu0 0.0
  %136 = vmatprep.subr.mxu0 0.0
  %137 = vmatpush1.msra.mxu0 0.0
  %138 = vmatprep.subr.mxu0 0.0
  %139 = vmatpush1.msra.mxu0 0.0
  %140 = vmatprep.subr.mxu0 0.0
  %141 = vmatpush1.msra.mxu0 0.0
  %142 = vmatprep.subr.mxu0 0.0
  %143 = vmatpush1.msra.mxu0 0.0
  %144 = vmatprep.subr.mxu0 0.0
  %145 = vmatpush1.msra.mxu0 0.0
  %146 = vmatprep.subr.mxu0 0.0
  %147 = vmatpush1.msra.mxu0 0.0
  %148 = vmatprep.subr.mxu0 0.0
  %149 = vmatpush1.msra.mxu0 %v106
  %150 = vmatprep.subr.mxu0 0.0
  %151 = vmatpush2.msra.mxu0 0.0
  %152 = vmatprep.subr.mxu0 0.0
  %153 = vmatpush2.msra.mxu0 0.0
  %154 = vmatprep.subr.mxu0 0.0
  %155 = vmatpush2.msra.mxu0 0.0
  %156 = vmatprep.subr.mxu0 0.0
  %157 = vmatpush2.msra.mxu0 0.0
  %158 = vmatprep.subr.mxu0 0.0
  %159 = vmatpush2.msra.mxu0 0.0
  %160 = vmatprep.subr.mxu0 0.0
  %161 = vmatpush2.msra.mxu0 0.0
  %162 = vmatprep.subr.mxu0 0.0
  %163 = vmatpush2.msra.mxu0 0.0
  %164 = vmatprep.subr.mxu0 0.0
  %165 = vmatpush2.msra.mxu0 0.0
  %166 = vmatprep.subr.mxu0 0.0
  %167 = vmatpush2.msra.mxu0 0.0
  %168 = vmatprep.subr.mxu0 0.0
  %169 = vmatpush2.msra.mxu0 0.0
  %170 = vmatprep.subr.mxu0 0.0
  %171 = vmatpush2.msra.mxu0 0.0
  %172 = vmatprep.subr.mxu0 0.0
  %173 = vmatpush2.msra.mxu0 0.0
  %174 = vmatprep.subr.mxu0 0.0
  %175 = vmatpush2.msra.mxu0 0.0
  %176 = vmatprep.subr.mxu0 0.0
  %177 = vmatpush2.msra.mxu0 0.0
  %178 = vmatprep.subr.mxu0 0.0
  %179 = vmatpush2.msra.mxu0 0.0
  %180 = vmatprep.subr.mxu0 0.0
  %181 = vmatpush2.msra.mxu0 0.0
  %182 = vmatprep.mubr.f32.mxu0 0.0
  %183 = vmatmul.mubr.f32.gmra.mxu0 %v116
  %v184 = vpop.f32.mrf.mxu0
  %v185 = vadd.f32 %v112, %v184
  %v186 = vpop.f32.mrf.mxu0
  %187 = vdwg.mxu0
  %188 = vst [vmem:[%s5] sm:$0x3] %v185
  // Predicated region
  $region22: #{pi_controller_forward.1} parent=0 // pred_check
    _
  $region23: #{pi_controller_forward.1} parent=0 // pred_check_branch
    %190 = sbr.rel (0) target = $region25
  $region24: #{pi_controller_forward.1} parent=0 // pred_region
    _
  $region25: #{pi_controller_forward.1} parent=0 // pred_fallthru
    _
  // Predicated region
  $region26: #{pi_controller_forward.1} parent=0 // pred_check
    _
  $region27: #{pi_controller_forward.1} parent=0 // pred_check_branch
    %192 = sbr.rel (0) target = $region29
  $region28: #{pi_controller_forward.1} parent=0 // pred_region
    _
  $region29: #{pi_controller_forward.1} parent=0 // pred_fallthru
    _

</llo_original>
